<compile_context>
chip_gen: v5e
topology: v5e:2x2
jax: 0.10.0
libtpu: 0.0.40
codegen_flags: <defaults>
</compile_context>

<pallas_src>
import jax
import jax.numpy as jnp
from jax.experimental import pallas as pl
from jax.experimental.pallas import tpu as pltpu

LANE = 128  # TPU vreg lane width; only the OUTPUT feature dim is padded to this.


def fused_gcn_kernel(adj_ref, x_ref, p1_ref, p2_ref, o_ref):
    """o = relu(A @ relu(A @ X @ W1 + b1) @ W2p + b2p), fully fused in VMEM.

    p1 = [W1; b1] : [F_in + 1, H]     (contraction dims un-padded)
    p2 = [W2p; b2p] : [H + 1, LANE]   (only the output lane dim is padded)
    """
    f_in = p1_ref.shape[0] - 1
    hid = p2_ref.shape[0] - 1

    adj = adj_ref[...]  # loaded once, reused by both aggregation steps

    w1 = p1_ref[0:f_in, :]           # [F_in, H]
    b1 = p1_ref[f_in:f_in + 1, :]    # [1, H]
    w2 = p2_ref[0:hid, :]            # [H, LANE]
    b2 = p2_ref[hid:hid + 1, :]      # [1, LANE]

    # Layer 1: aggregate over the narrow F_in dim first: (A @ X) @ W1.
    ax = jnp.dot(adj, x_ref[...], preferred_element_type=jnp.float32)
    h = jnp.maximum(
        jnp.dot(ax, w1, preferred_element_type=jnp.float32) + b1, 0.0)

    # Layer 2: aggregate over the (un-padded) hidden dim: (A @ H) @ W2p.
    ah = jnp.dot(adj, h, preferred_element_type=jnp.float32)
    o_ref[...] = jnp.maximum(
        jnp.dot(ah, w2, preferred_element_type=jnp.float32) + b2, 0.0
    ).astype(o_ref.dtype)


def normalized_adjacency(edge_index, num_nodes):
    """Dense D^{-1/2}(A + I)D^{-1/2} matching PyG gcn_norm defaults.

    add_remaining_self_loops semantics: every node ends up with exactly one
    weight-1 self loop; pre-existing self loops in edge_index are not
    double-counted.  Duplicate non-loop edges accumulate, as in PyG.
    """
    src, dst = edge_index[0], edge_index[1]
    non_loop = (src != dst).astype(jnp.float32)
    a = jnp.zeros((num_nodes, num_nodes), jnp.float32).at[dst, src].add(non_loop)
    a = a + jnp.eye(num_nodes, dtype=jnp.float32)
    deg = a.sum(axis=1)  # in-degree (incoming edge weights per target node)
    dinv = jnp.where(deg > 0, jax.lax.rsqrt(deg), 0.0)
    return dinv[:, None] * a * dinv[None, :]


def glorot(key, shape):
    fan_in, fan_out = shape
    limit = jnp.sqrt(6.0 / (fan_in + fan_out))
    return jax.random.uniform(key, shape, jnp.float32, -limit, limit)


def gcn_forward(x, edge_index, params):
    n, f_in = x.shape
    hidden = params["w1"].shape[1]
    out_pad = pl.cdiv(hidden, LANE) * LANE  # lane-dense output width (>= 128)

    adj = normalized_adjacency(edge_index, n)

    # Pack parameters into two operands (fewer DMA descriptors on a
    # launch-overhead-bound call).  K dims stay un-padded; only the output
    # lane dim of layer 2 is zero-padded -> padded output cols are relu(0)=0.
    p1 = jnp.concatenate([params["w1"], params["b1"].reshape(1, hidden)], axis=0)
    w2p = jnp.pad(params["w2"], ((0, 0), (0, out_pad - hidden)))
    b2p = jnp.pad(params["b2"].reshape(1, hidden), ((0, 0), (0, out_pad - hidden)))
    p2 = jnp.concatenate([w2p, b2p], axis=0)

    flops = 2 * (n * n * f_in + n * f_in * hidden + n * n * hidden + n * hidden * out_pad)
    bytes_accessed = 4 * (adj.size + x.size + p1.size + p2.size + n * out_pad)

    out = pl.pallas_call(
        fused_gcn_kernel,
        out_shape=jax.ShapeDtypeStruct((n, out_pad), jnp.float32),
        in_specs=[
            pl.BlockSpec(memory_space=pltpu.VMEM),  # adj [N, N]
            pl.BlockSpec(memory_space=pltpu.VMEM),  # x   [N, F_in]
            pl.BlockSpec(memory_space=pltpu.VMEM),  # p1  [F_in+1, H]
            pl.BlockSpec(memory_space=pltpu.VMEM),  # p2  [H+1, out_pad]
        ],
        out_specs=pl.BlockSpec(memory_space=pltpu.VMEM),
        compiler_params=pltpu.CompilerParams(
            # Operands total ~30 KiB; keep the scoped-VMEM reservation tiny
            # (with generous headroom for internal scratch).
            vmem_limit_bytes=2 * 1024 * 1024,
        ),
        cost_estimate=pl.CostEstimate(
            flops=flops, transcendentals=0, bytes_accessed=bytes_accessed),
    )(adj, x, p1, p2)

    return out[:, :hidden]


def gcn_reference(x, edge_index, params):
    """Plain-JAX reference for correctness checking."""
    adj = normalized_adjacency(edge_index, x.shape[0])
    hp = jax.lax.Precision.HIGHEST
    h = jax.nn.relu(jnp.dot(jnp.dot(adj, x, precision=hp), params["w1"], precision=hp)
                    + params["b1"][None, :])
    o = jax.nn.relu(jnp.dot(jnp.dot(adj, h, precision=hp), params["w2"], precision=hp)
                    + params["b2"][None, :])
    return o


if __name__ == "__main__":
    num_nodes = 16
    num_node_features = 8
    hidden_channels = 32
    num_edges = 40

    key = jax.random.PRNGKey(0)
    kx, ke1, ke2, k1, k2 = jax.random.split(key, 5)

    # Deterministic synthetic inputs / parameters.
    x = jax.random.normal(kx, (num_nodes, num_node_features), jnp.float32)
    src = jax.random.randint(ke1, (num_edges,), 0, num_nodes)
    dst = jax.random.randint(ke2, (num_edges,), 0, num_nodes)
    edge_index = jnp.stack([src, dst]).astype(jnp.int32)

    params = {
        "w1": glorot(k1, (num_node_features, hidden_channels)),
        "b1": jnp.zeros((hidden_channels,), jnp.float32),
        "w2": glorot(k2, (hidden_channels, hidden_channels)),
        "b2": jnp.zeros((hidden_channels,), jnp.float32),
    }

    out = jax.jit(gcn_forward)(x, edge_index, params)
    jax.block_until_ready(out)

    assert out.shape == (num_nodes, hidden_channels)
    assert bool(jnp.all(out >= 0.0))  # ReLU output

    ref = gcn_reference(x, edge_index, params)
    assert bool(jnp.allclose(out, ref, atol=5e-2, rtol=5e-2)), "mismatch vs JAX reference"

    print("KERNEL_OK")
</pallas_src>

<mosaic_0001>
module attributes {stable_mosaic.version = 11 : i64} {
  func.func @fused_gcn_kernel(%arg0: memref<16x16xf32, #tpu.memory_space<vmem>>, %arg1: memref<16x8xf32, #tpu.memory_space<vmem>>, %arg2: memref<9x32xf32, #tpu.memory_space<vmem>>, %arg3: memref<33x128xf32, #tpu.memory_space<vmem>>, %arg4: memref<16x128xf32, #tpu.memory_space<vmem>>) attributes {dimension_semantics = [], scalar_prefetch = 0 : i64, scratch_operands = 0 : i64, tpu.core_type = #tpu.core_type<tc>} {
    %c0 = arith.constant 0 : index
    %c0_0 = arith.constant 0 : index
    %0 = vector.load %arg0[%c0, %c0_0] : memref<16x16xf32, #tpu.memory_space<vmem>>, vector<16x16xf32>
    %c0_1 = arith.constant 0 : index
    %c0_2 = arith.constant 0 : index
    %1 = vector.load %arg2[%c0_1, %c0_2] : memref<9x32xf32, #tpu.memory_space<vmem>>, vector<8x32xf32>
    %c8 = arith.constant 8 : index
    %c0_3 = arith.constant 0 : index
    %2 = vector.load %arg2[%c8, %c0_3] : memref<9x32xf32, #tpu.memory_space<vmem>>, vector<1x32xf32>
    %c0_4 = arith.constant 0 : index
    %c0_5 = arith.constant 0 : index
    %3 = vector.load %arg3[%c0_4, %c0_5] : memref<33x128xf32, #tpu.memory_space<vmem>>, vector<32x128xf32>
    %c32 = arith.constant 32 : index
    %c0_6 = arith.constant 0 : index
    %4 = vector.load %arg3[%c32, %c0_6] : memref<33x128xf32, #tpu.memory_space<vmem>>, vector<1x128xf32>
    %c0_7 = arith.constant 0 : index
    %c0_8 = arith.constant 0 : index
    %5 = vector.load %arg1[%c0_7, %c0_8] : memref<16x8xf32, #tpu.memory_space<vmem>>, vector<16x8xf32>
    %cst = arith.constant dense<0.000000e+00> : vector<16x8xf32>
    %6 = tpu.matmul %0, %5, %cst {dimension_numbers = #tpu.dot_dimension_numbers<[1], [0], [0], [1], [0, 0, 1, 1], [], []>} : vector<16x16xf32>, vector<16x8xf32>, vector<16x8xf32> -> vector<16x8xf32>
    %cst_9 = arith.constant dense<0.000000e+00> : vector<16x32xf32>
    %7 = tpu.matmul %6, %1, %cst_9 {dimension_numbers = #tpu.dot_dimension_numbers<[1], [0], [0], [1], [0, 0, 1, 1], [], []>} : vector<16x8xf32>, vector<8x32xf32>, vector<16x32xf32> -> vector<16x32xf32>
    %8 = vector.broadcast %2 : vector<1x32xf32> to vector<16x32xf32>
    %9 = arith.addf %7, %8 : vector<16x32xf32>
    %cst_10 = arith.constant 0.000000e+00 : f32
    %10 = vector.broadcast %cst_10 : f32 to vector<16x32xf32>
    %11 = arith.maximumf %9, %10 : vector<16x32xf32>
    %cst_11 = arith.constant dense<0.000000e+00> : vector<16x32xf32>
    %12 = tpu.matmul %0, %11, %cst_11 {dimension_numbers = #tpu.dot_dimension_numbers<[1], [0], [0], [1], [0, 0, 1, 1], [], []>} : vector<16x16xf32>, vector<16x32xf32>, vector<16x32xf32> -> vector<16x32xf32>
    %cst_12 = arith.constant dense<0.000000e+00> : vector<16x128xf32>
    %13 = tpu.matmul %12, %3, %cst_12 {dimension_numbers = #tpu.dot_dimension_numbers<[1], [0], [0], [1], [0, 0, 1, 1], [], []>} : vector<16x32xf32>, vector<32x128xf32>, vector<16x128xf32> -> vector<16x128xf32>
    %14 = vector.broadcast %4 : vector<1x128xf32> to vector<16x128xf32>
    %15 = arith.addf %13, %14 : vector<16x128xf32>
    %cst_13 = arith.constant 0.000000e+00 : f32
    %16 = vector.broadcast %cst_13 : f32 to vector<16x128xf32>
    %17 = arith.maximumf %15, %16 : vector<16x128xf32>
    %c0_14 = arith.constant 0 : index
    %c0_15 = arith.constant 0 : index
    %18 = vector.load %arg4[%c0_14, %c0_15] : memref<16x128xf32, #tpu.memory_space<vmem>>, vector<16x128xf32>
    tpu.vector_store %arg4[%c0_14, %c0_15], %17 {strides = array<i32>} : memref<16x128xf32, #tpu.memory_space<vmem>>, vector<16x128xf32>,
    return
  }
}

</mosaic_0001>

<llo_original>
// kernel: gcn_forward.1
$region0: #{gcn_forward.1}
  #allocation0 [shape = 'u32[]', space=smem, size = 0x4, offset = 0x4, fixed_abs, tag = 'smem constant byte address 0x4 - core index']
  #allocation1 [shape = 'u32[72,128]{1,0:T(1,128)}', space=vmem, size = 0x9000, scoped, tag = 'internal scratch']
  %s0 = inlined_call_operand.vmem [shape: f32[16,16], index: 0, kind: input, shape index: {}]
  %s1 = inlined_call_operand.vmem [shape: f32[16,8], index: 1, kind: input, shape index: {}]
  %s2 = inlined_call_operand.vmem [shape: f32[9,32], index: 2, kind: input, shape index: {}]
  %s3 = inlined_call_operand.vmem [shape: f32[33,128], index: 3, kind: input, shape index: {}]
  %s4 = inlined_call_operand.hbm [shape: f32[16,128], index: 4, kind: output, shape index: {}]
  %s5 = sld [smem:[#allocation0]]
  $region26: #{gcn_forward.1} parent=0
    _
  %s7 = ssub.s32 1, %s5
  %s8 = scalar_select 0, %s7, %s5
  $region1: #{gcn_forward.1} parent=0
    #allocation2 [shape = 'u8[8192]{0}', space=vmem, size = 0x2000, scoped, tag = 'output window, operand 0, single buffered']
    #allocation3 [shape = 's32[1]{0}', space=sflag, size = 0x4, scoped, tag = 'scoped memory for gcn_forward.1']
    %9 = vsyncpa [#allocation3], 0
    // Predicated region
    $region2: #{gcn_forward.1} parent=1 // pred_check
      _
    $region3: #{gcn_forward.1} parent=1 // pred_check_branch
      %11 = sbr.rel (0) target = $region5
    $region4: #{gcn_forward.1} parent=1 // pred_region
      _
    $region5: #{gcn_forward.1} parent=1 // pred_fallthru
      _
    // Predicated region
    $region6: #{gcn_forward.1} parent=1 // pred_check
      _
    $region7: #{gcn_forward.1} parent=1 // pred_check_branch
      %13 = sbr.rel (0) target = $region9
    $region8: #{gcn_forward.1} parent=1 // pred_region
      _
    $region9: #{gcn_forward.1} parent=1 // pred_fallthru
      _
    // Predicated region
    $region10: #{gcn_forward.1} parent=1 // pred_check
      _
    $region11: #{gcn_forward.1} parent=1 // pred_check_branch
      %15 = sbr.rel (0) target = $region13
    $region12: #{gcn_forward.1} parent=1 // pred_region
      _
    $region13: #{gcn_forward.1} parent=1 // pred_fallthru
      _
    // Predicated region
    $region14: #{gcn_forward.1} parent=1 // pred_check
      _
    $region15: #{gcn_forward.1} parent=1 // pred_check_branch
      %17 = sbr.rel (0) target = $region17
    $region16: #{gcn_forward.1} parent=1 // pred_region
      _
    $region17: #{gcn_forward.1} parent=1 // pred_fallthru
      _
    %v18 = vld [vmem:[%s0] sm:$0xff]
    %v19 = vld [vmem:[%s0 + $0x8] sm:$0xff]
    %v20 = vld [vmem:[%s2] sm:$0xff]
    %v21 = vld [vmem:[%s2 + $0x8] sm:$0x1]
    %v22 = vld [vmem:[%s3] sm:$0xff]
    %v23 = vld [vmem:[%s3 + $0x8] sm:$0xff]
    %v24 = vld [vmem:[%s3 + $0x10] sm:$0xff]
    %v25 = vld [vmem:[%s3 + $0x18] sm:$0xff]
    %v26 = vld [vmem:[%s3 + $0x20] sm:$0x1]
    %v27 = vld [vmem:[%s1] sm:$0xff]
    %v28 = vld [vmem:[%s1 + $0x8] sm:$0xff]
    %vm29 = vcmask 130048
    %v31 = vsel %vm29, %v18, 0
    %v34 = vsel %vm29, %v19, 0
    %36 = vmatpush.msra.mxu0 0.0
    %37 = vmatpush.msra.mxu0 0.0
    %38 = vmatpush.msra.mxu0 0.0
    %39 = vmatpush.msra.mxu0 0.0
    %40 = vmatpush.msra.mxu0 0.0
    %41 = vmatpush.msra.mxu0 0.0
    %42 = vmatpush.msra.mxu0 0.0
    %43 = vmatpush.msra.mxu0 0.0
    %44 = vmatpush.msra.mxu0 0.0
    %45 = vmatpush.msra.mxu0 0.0
    %46 = vmatpush.msra.mxu0 0.0
    %47 = vmatpush.msra.mxu0 0.0
    %48 = vmatpush.msra.mxu0 0.0
    %49 = vmatpush.msra.mxu0 0.0
    %50 = vmatpush.msra.mxu0 %v28
    %51 = vmatpush.msra.mxu0 %v27
    %52 = vmatmul.f32.gmra.mxu0 %v31
    %v53 = vpop.f32.mrf.mxu0
    %v54 = vadd.f32 0.0, %v53
    %55 = vmatmul.f32.gmra.mxu0 %v34
    %v56 = vpop.f32.mrf.mxu0
    %v57 = vadd.f32 0.0, %v56
    %58 = vdwg.mxu0
    %v59 = vperm.slane %v21, 0
    %vm60 = vcmask 64512
    %v62 = vsel %vm60, %v54, 0
    %v65 = vsel %vm60, %v57, 0
    %67 = vmatpush.msra.mxu0 0.0
    %68 = vmatpush.msra.mxu0 0.0
    %69 = vmatpush.msra.mxu0 0.0
    %70 = vmatpush.msra.mxu0 0.0
    %71 = vmatpush.msra.mxu0 0.0
    %72 = vmatpush.msra.mxu0 0.0
    %73 = vmatpush.msra.mxu0 0.0
    %74 = vmatpush.msra.mxu0 0.0
    %75 = vmatpush.msra.mxu0 0.0
    %76 = vmatpush.msra.mxu0 0.0
    %77 = vmatpush.msra.mxu0 0.0
    %78 = vmatpush.msra.mxu0 0.0
    %79 = vmatpush.msra.mxu0 0.0
    %80 = vmatpush.msra.mxu0 0.0
    %81 = vmatpush.msra.mxu0 0.0
    %82 = vmatpush.msra.mxu0 %v20
    %83 = vmatmul.f32.gmra.mxu0 %v62
    %v84 = vpop.f32.mrf.mxu0
    %v85 = vadd.f32 %v59, %v84
    %86 = vmatmul.f32.gmra.mxu0 %v65
    %v87 = vpop.f32.mrf.mxu0
    %v88 = vadd.f32 %v59, %v87
    %89 = vdwg.mxu0
    %v90 = vmax.f32 %v85, 0.0
    %v91 = vmax.f32 %v88, 0.0
    %92 = vmatpush.msra.mxu0 0.0
    %93 = vmatpush.msra.mxu0 0.0
    %94 = vmatpush.msra.mxu0 0.0
    %95 = vmatpush.msra.mxu0 0.0
    %96 = vmatpush.msra.mxu0 0.0
    %97 = vmatpush.msra.mxu0 0.0
    %98 = vmatpush.msra.mxu0 0.0
    %99 = vmatpush.msra.mxu0 0.0
    %100 = vmatpush.msra.mxu0 0.0
    %101 = vmatpush.msra.mxu0 0.0
    %102 = vmatpush.msra.mxu0 0.0
    %103 = vmatpush.msra.mxu0 0.0
    %104 = vmatpush.msra.mxu0 0.0
    %105 = vmatpush.msra.mxu0 0.0
    %106 = vmatpush.msra.mxu0 %v91
    %107 = vmatpush.msra.mxu0 %v90
    %108 = vmatmul.f32.gmra.mxu0 %v31
    %v109 = vpop.f32.mrf.mxu0
    %v110 = vadd.f32 0.0, %v109
    %111 = vmatmul.f32.gmra.mxu0 %v34
    %v112 = vpop.f32.mrf.mxu0
    %v113 = vadd.f32 0.0, %v112
    %114 = vdwg.mxu0
    %v115 = vperm.slane %v26, 0
    %vm116 = vcmask 261120
    %v118 = vsel %vm116, %v110, 0
    %v121 = vsel %vm116, %v113, 0
    %123 = vmatpush.msra.mxu0 0.0
    %124 = vmatpush.msra.mxu0 0.0
    %125 = vmatpush.msra.mxu0 0.0
    %126 = vmatpush.msra.mxu0 0.0
    %127 = vmatpush.msra.mxu0 0.0
    %128 = vmatpush.msra.mxu0 0.0
    %129 = vmatpush.msra.mxu0 0.0
    %130 = vmatpush.msra.mxu0 0.0
    %131 = vmatpush.msra.mxu0 0.0
    %132 = vmatpush.msra.mxu0 0.0
    %133 = vmatpush.msra.mxu0 0.0
    %134 = vmatpush.msra.mxu0 0.0
    %135 = vmatpush.msra.mxu0 %v25
    %136 = vmatpush.msra.mxu0 %v24
    %137 = vmatpush.msra.mxu0 %v23
    %138 = vmatpush.msra.mxu0 %v22
    %139 = vmatmul.f32.gmra.mxu0 %v118
    %v140 = vpop.f32.mrf.mxu0
    %v141 = vadd.f32 %v115, %v140
    %142 = vmatmul.f32.gmra.mxu0 %v121
    %v143 = vpop.f32.mrf.mxu0
    %v144 = vadd.f32 %v115, %v143
    %145 = vdwg.mxu0
    %v146 = vmax.f32 %v141, 0.0
    %v147 = vmax.f32 %v144, 0.0
    %148 = vst [vmem:[#allocation2] sm:$0xff] %v146
    %149 = vst [vmem:[#allocation2 + $0x8] sm:$0xff] %v147
    // Predicated region
    $region18: #{gcn_forward.1} parent=1 // pred_check
      _
    $region19: #{gcn_forward.1} parent=1 // pred_check_branch
      %151 = sbr.rel (0) target = $region21
    $region20: #{gcn_forward.1} parent=1 // pred_region
      %153 = vsyncadd [#allocation3], 0
      %s154 = sshll.u32 [#allocation2], 4
      %s155 = int_to_ptr.vmem [resolvable:$true] %s154
      %s156 = sshll.u32 %s4, 4
      %s157 = int_to_ptr.hbm [resolvable:$true] %s156
      %162 = dma.vmem_to_hbm [thread:$0]  %s155, 256, %s157, [#allocation3], 128, 128, 8
    $region21: #{gcn_forward.1} parent=1 // pred_fallthru
      _
    // Predicated region
    $region22: #{gcn_forward.1} parent=1 // pred_check
      _
    $region23: #{gcn_forward.1} parent=1 // pred_check_branch
      %164 = sbr.rel (0) target = $region25
    $region24: #{gcn_forward.1} parent=1 // pred_region
      %166 = dma.done [#allocation3], 256
    $region25: #{gcn_forward.1} parent=1 // pred_fallthru
      _
    %167 = vsyncpa [#allocation3], 1

</llo_original>
